<compile_context>
chip_gen: v5e
topology: v5e:2x2
jax: 0.10.0
libtpu: 0.0.40
codegen_flags: <defaults>
</compile_context>

<pallas_src>
import math

import jax
import jax.numpy as jnp
from jax.experimental import pallas as pl
from jax.experimental.pallas import tpu as pltpu


def _round_up(x: int, m: int) -> int:
    return ((x + m - 1) // m) * m


def _disc_kernel(x_ref, w1_ref, b1_ref, w2r_ref, b2_ref, o_ref, acc_ref):
    # x:   (tm, tk) f32      w1: (tk, H) bf16
    # b1:  (1, H)   f32      w2r:(1, H)  f32     b2: (1, 1) f32
    # o:   (tm, 128) f32     acc:(tm, H) f32 scratch (persists over k)
    k = pl.program_id(1)

    @pl.when(k == 0)
    def _init():
        acc_ref[...] = jnp.zeros_like(acc_ref)

    # Partial first matmul on the MXU, bf16 operands, f32 accumulation.
    acc_ref[...] += jnp.dot(
        x_ref[...].astype(jnp.bfloat16),
        w1_ref[...],
        preferred_element_type=jnp.float32,
    )

    @pl.when(k == pl.num_programs(1) - 1)
    def _epilogue():
        # Bias + LeakyReLU(0.2) on the VPU.
        h = acc_ref[...] + b1_ref[...]
        h = jnp.where(h > 0, h, 0.2 * h)
        # Head: width-1 output -> mul + cross-lane reduce (VPU/XLU), not MXU.
        logit = jnp.sum(h * w2r_ref[...], axis=-1, keepdims=True) + b2_ref[...]
        # Sigmoid: exp + approximate reciprocal, both on the EUP.
        prob = pl.reciprocal(1.0 + jnp.exp(-logit), approx=True)
        # Single lane-dense store per batch tile.
        o_ref[...] = jnp.broadcast_to(prob, o_ref.shape)


def discriminator_forward(x_nchw, w1, b1, w2, b2):
    """x_nchw: (N, C, H, W). Returns (N, 1) float32 probabilities."""
    n = x_nchw.shape[0]
    d = int(math.prod(x_nchw.shape[1:]))
    h = w1.shape[1]

    x_flat = x_nchw.reshape(n, d).astype(jnp.float32)  # glue: flatten in JAX

    # --- tile plan -----------------------------------------------------------
    # Batch tile: multiple of 8 sublanes, capped at 256 rows.
    tm = min(256, _round_up(n, 8))
    n_pad = _round_up(n, tm)
    # Reduction tile over D: multiple of 128 lanes that divides D, else full D.
    tk = d
    for cand in (512, 256, 128):
        if d % cand == 0:
            tk = cand
            break

    x_p = x_flat if n_pad == n else jnp.pad(x_flat, ((0, n_pad - n), (0, 0)))

    w1_b = w1.astype(jnp.bfloat16)                 # bf16 weights in HBM
    b1_r = b1.reshape(1, h).astype(jnp.float32)
    w2_r = w2.reshape(1, h).astype(jnp.float32)    # head as a (1, H) row
    b2_r = b2.reshape(1, 1).astype(jnp.float32)

    grid = (n_pad // tm, d // tk)

    cost = pl.CostEstimate(
        flops=2 * n_pad * d * h + 4 * n_pad * h,
        transcendentals=n_pad,
        bytes_accessed=x_p.size * 4 + w1_b.size * 2 + n_pad * 128 * 4,
    )

    out = pl.pallas_call(
        _disc_kernel,
        out_shape=jax.ShapeDtypeStruct((n_pad, 128), jnp.float32),
        grid=grid,
        in_specs=[
            pl.BlockSpec((tm, tk), lambda i, k: (i, k)),   # x tile
            pl.BlockSpec((tk, h), lambda i, k: (k, 0)),    # w1 tile (bf16)
            pl.BlockSpec((1, h), lambda i, k: (0, 0)),     # b1 (resident)
            pl.BlockSpec((1, h), lambda i, k: (0, 0)),     # w2 row (resident)
            pl.BlockSpec((1, 1), lambda i, k: (0, 0)),     # b2 (resident)
        ],
        out_specs=pl.BlockSpec((tm, 128), lambda i, k: (i, 0)),
        scratch_shapes=[pltpu.VMEM((tm, h), jnp.float32)],
        compiler_params=pltpu.CompilerParams(
            dimension_semantics=("parallel", "arbitrary"),
            vmem_limit_bytes=32 << 20,
        ),
        cost_estimate=cost,
    )(x_p, w1_b, b1_r, w2_r, b2_r)

    return out[:n, :1]


if __name__ == "__main__":
    # Small shapes consistent with an image discriminator:
    # batch=2, channels=4, img_size=16 -> flattened D = 4*16*16 = 1024
    B, C, IMG = 2, 4, 16
    D = C * IMG * IMG
    HID = 32

    key = jax.random.PRNGKey(0)
    kx, kw1, kw2 = jax.random.split(key, 3)

    x = jax.random.normal(kx, (B, C, IMG, IMG), dtype=jnp.float32)

    # Deterministic parameter init (synthetic; no checkpoint load).
    w1 = jax.random.normal(kw1, (D, HID), dtype=jnp.float32) * 0.02
    b1 = jnp.zeros((1, HID), dtype=jnp.float32)
    w2 = jax.random.normal(kw2, (HID, 1), dtype=jnp.float32) * 0.02
    b2 = jnp.zeros((1, 1), dtype=jnp.float32)

    out = discriminator_forward(x, w1, b1, w2, b2)
    out = jax.block_until_ready(out)

    # Pure-JAX reference of the same forward (with the same bf16 weight quant).
    x_q = x.reshape(B, D).astype(jnp.bfloat16).astype(jnp.float32)
    w1_q = w1.astype(jnp.bfloat16).astype(jnp.float32)
    h_ref = x_q @ w1_q + b1
    h_ref = jnp.where(h_ref > 0, h_ref, 0.2 * h_ref)
    ref = jax.nn.sigmoid(h_ref @ w2 + b2)

    assert out.shape == (B, 1)
    assert jnp.allclose(out, ref, atol=1e-2, rtol=1e-2)

    print("KERNEL_OK")
</pallas_src>

<mosaic_0001>
module attributes {stable_mosaic.version = 11 : i64} {
  func.func @_disc_kernel(%arg0: i32, %arg1: i32, %arg2: memref<8x512xf32, #tpu.memory_space<vmem>>, %arg3: memref<512x32xbf16, #tpu.memory_space<vmem>>, %arg4: memref<1x32xf32, #tpu.memory_space<vmem>>, %arg5: memref<1x32xf32, #tpu.memory_space<vmem>>, %arg6: memref<1x1xf32, #tpu.memory_space<vmem>>, %arg7: memref<8x128xf32, #tpu.memory_space<vmem>>, %arg8: memref<8x32xf32, #tpu.memory_space<vmem>>) attributes {dimension_semantics = [#tpu.dimension_semantics<parallel>, #tpu.dimension_semantics<arbitrary>], iteration_bounds = array<i64: 1, 2>, scalar_prefetch = 0 : i64, scratch_operands = 1 : i64, tpu.core_type = #tpu.core_type<tc>, window_params = [{transform_indices = @transform_0, window_bounds = array<i64: 8, 512>}, {transform_indices = @transform_1, window_bounds = array<i64: 512, 32>}, {pipeline_mode = #tpu.pipeline_mode<synchronous>, transform_indices = @transform_2, window_bounds = array<i64: 1, 32>}, {pipeline_mode = #tpu.pipeline_mode<synchronous>, transform_indices = @transform_3, window_bounds = array<i64: 1, 32>}, {pipeline_mode = #tpu.pipeline_mode<synchronous>, transform_indices = @transform_4, window_bounds = array<i64: 1, 1>}, {transform_indices = @transform_5, window_bounds = array<i64: 8, 128>}]} {
    %c0_i32 = arith.constant 0 : i32
    %0 = arith.cmpi eq, %arg1, %c0_i32 : i32
    %1 = arith.extui %0 : i1 to i32
    %c0_i32_0 = arith.constant 0 : i32
    %2 = arith.cmpi ne, %1, %c0_i32_0 : i32
    scf.if %2 {
      %cst_9 = arith.constant 0.000000e+00 : f32
      %13 = vector.broadcast %cst_9 : f32 to vector<8x32xf32>
      %c0_10 = arith.constant 0 : index
      %c0_11 = arith.constant 0 : index
      %14 = vector.load %arg8[%c0_10, %c0_11] : memref<8x32xf32, #tpu.memory_space<vmem>>, vector<8x32xf32>
      tpu.vector_store %arg8[%c0_10, %c0_11], %13 {strides = array<i32>} : memref<8x32xf32, #tpu.memory_space<vmem>>, vector<8x32xf32>,
    } else {
    }
    %c0 = arith.constant 0 : index
    %c0_1 = arith.constant 0 : index
    %3 = vector.load %arg8[%c0, %c0_1] : memref<8x32xf32, #tpu.memory_space<vmem>>, vector<8x32xf32>
    %c0_2 = arith.constant 0 : index
    %c0_3 = arith.constant 0 : index
    %4 = vector.load %arg2[%c0_2, %c0_3] : memref<8x512xf32, #tpu.memory_space<vmem>>, vector<8x512xf32>
    %5 = arith.truncf %4 : vector<8x512xf32> to vector<8x512xbf16>
    %c0_4 = arith.constant 0 : index
    %c0_5 = arith.constant 0 : index
    %6 = vector.load %arg3[%c0_4, %c0_5] : memref<512x32xbf16, #tpu.memory_space<vmem>>, vector<512x32xbf16>
    %cst = arith.constant dense<0.000000e+00> : vector<8x32xf32>
    %7 = tpu.matmul %5, %6, %cst {dimension_numbers = #tpu.dot_dimension_numbers<[1], [0], [0], [1], [0, 0, 1, 1], [], []>} : vector<8x512xbf16>, vector<512x32xbf16>, vector<8x32xf32> -> vector<8x32xf32>
    %8 = arith.addf %3, %7 : vector<8x32xf32>
    %c0_6 = arith.constant 0 : index
    %c0_7 = arith.constant 0 : index
    %9 = vector.load %arg8[%c0_6, %c0_7] : memref<8x32xf32, #tpu.memory_space<vmem>>, vector<8x32xf32>
    tpu.vector_store %arg8[%c0_6, %c0_7], %8 {strides = array<i32>} : memref<8x32xf32, #tpu.memory_space<vmem>>, vector<8x32xf32>,
    %c1_i32 = arith.constant 1 : i32
    %10 = arith.cmpi eq, %arg1, %c1_i32 : i32
    %11 = arith.extui %10 : i1 to i32
    %c0_i32_8 = arith.constant 0 : i32
    %12 = arith.cmpi ne, %11, %c0_i32_8 : i32
    scf.if %12 {
      %c0_9 = arith.constant 0 : index
      %c0_10 = arith.constant 0 : index
      %13 = vector.load %arg8[%c0_9, %c0_10] : memref<8x32xf32, #tpu.memory_space<vmem>>, vector<8x32xf32>
      %c0_11 = arith.constant 0 : index
      %c0_12 = arith.constant 0 : index
      %14 = vector.load %arg4[%c0_11, %c0_12] : memref<1x32xf32, #tpu.memory_space<vmem>>, vector<1x32xf32>
      %15 = vector.broadcast %14 : vector<1x32xf32> to vector<8x32xf32>
      %16 = arith.addf %13, %15 : vector<8x32xf32>
      %cst_13 = arith.constant 0.000000e+00 : f32
      %17 = vector.broadcast %cst_13 : f32 to vector<8x32xf32>
      %18 = arith.cmpf ogt, %16, %17 : vector<8x32xf32>
      %cst_14 = arith.constant 2.000000e-01 : f32
      %19 = vector.broadcast %cst_14 : f32 to vector<8x32xf32>
      %20 = arith.mulf %19, %16 : vector<8x32xf32>
      %21 = arith.select %18, %16, %20 : vector<8x32xi1>, vector<8x32xf32>
      %c0_15 = arith.constant 0 : index
      %c0_16 = arith.constant 0 : index
      %22 = vector.load %arg5[%c0_15, %c0_16] : memref<1x32xf32, #tpu.memory_space<vmem>>, vector<1x32xf32>
      %23 = vector.broadcast %22 : vector<1x32xf32> to vector<8x32xf32>
      %24 = arith.mulf %21, %23 : vector<8x32xf32>
      %cst_17 = arith.constant dense<0.000000e+00> : vector<8xf32>
      %25 = vector.multi_reduction <add>, %24, %cst_17 [1] : vector<8x32xf32> to vector<8xf32>
      %26 = vector.shape_cast %25 : vector<8xf32> to vector<8x1xf32>
      %c0_18 = arith.constant 0 : index
      %c0_19 = arith.constant 0 : index
      %27 = vector.load %arg6[%c0_18, %c0_19] : memref<1x1xf32, #tpu.memory_space<vmem>>, vector<1x1xf32>
      %28 = vector.broadcast %27 : vector<1x1xf32> to vector<8x1xf32>
      %29 = arith.addf %26, %28 : vector<8x1xf32>
      %cst_20 = arith.constant 0.000000e+00 : f32
      %30 = vector.broadcast %cst_20 : f32 to vector<8x1xf32>
      %31 = arith.subf %30, %29 : vector<8x1xf32>
      %32 = math.exp %31 : vector<8x1xf32>
      %cst_21 = arith.constant 1.000000e+00 : f32
      %33 = vector.broadcast %cst_21 : f32 to vector<8x1xf32>
      %34 = arith.addf %33, %32 : vector<8x1xf32>
      %35 = tpu.reciprocal %34 {approx = true} : vector<8x1xf32> -> vector<8x1xf32>
      %36 = vector.shape_cast %35 : vector<8x1xf32> to vector<8x1xf32>
      %37 = vector.broadcast %36 : vector<8x1xf32> to vector<8x128xf32>
      %c0_22 = arith.constant 0 : index
      %c0_23 = arith.constant 0 : index
      %38 = vector.load %arg7[%c0_22, %c0_23] : memref<8x128xf32, #tpu.memory_space<vmem>>, vector<8x128xf32>
      tpu.vector_store %arg7[%c0_22, %c0_23], %37 {strides = array<i32>} : memref<8x128xf32, #tpu.memory_space<vmem>>, vector<8x128xf32>,
    } else {
    }
    return
  }
  func.func @transform_0(%arg0: i32, %arg1: i32) -> (i32, i32) {
    %c0_i32 = arith.constant 0 : i32
    return %arg0, %arg1 : i32, i32
  }
  func.func @transform_1(%arg0: i32, %arg1: i32) -> (i32, i32) {
    %c0_i32 = arith.constant 0 : i32
    %c0_i32_0 = arith.constant 0 : i32
    return %arg1, %c0_i32 : i32, i32
  }
  func.func @transform_2(%arg0: i32, %arg1: i32) -> (i32, i32) {
    %c0_i32 = arith.constant 0 : i32
    %c0_i32_0 = arith.constant 0 : i32
    %c0_i32_1 = arith.constant 0 : i32
    return %c0_i32, %c0_i32_0 : i32, i32
  }
  func.func @transform_3(%arg0: i32, %arg1: i32) -> (i32, i32) {
    %c0_i32 = arith.constant 0 : i32
    %c0_i32_0 = arith.constant 0 : i32
    %c0_i32_1 = arith.constant 0 : i32
    return %c0_i32, %c0_i32_0 : i32, i32
  }
  func.func @transform_4(%arg0: i32, %arg1: i32) -> (i32, i32) {
    %c0_i32 = arith.constant 0 : i32
    %c0_i32_0 = arith.constant 0 : i32
    %c0_i32_1 = arith.constant 0 : i32
    return %c0_i32, %c0_i32_0 : i32, i32
  }
  func.func @transform_5(%arg0: i32, %arg1: i32) -> (i32, i32) {
    %c0_i32 = arith.constant 0 : i32
    %c0_i32_0 = arith.constant 0 : i32
    return %arg0, %c0_i32 : i32, i32
  }
}

</mosaic_0001>

<llo_original>
// kernel: tpu_custom_call.1
$region0: #{tpu_custom_call.1}
  #allocation0 [shape = 'u32[]', space=smem, size = 0x4, offset = 0x4, fixed_abs, tag = 'smem constant byte address 0x4 - core index']
  #allocation1 [shape = 'u32[72,128]{1,0:T(1,128)}', space=vmem, size = 0x9000, scoped, tag = 'internal scratch']
  #allocation2 [shape = 'f32[8,32]{1,0:T(8,128)}', space=vmem, size = 0x1000, scoped, tag = 'scratch operand']
  #allocation3 [shape = 'f32[1,1]{1,0:T(1,128)S(1)}', space=vmem, size = 0x200, scoped, tag = 'scoped memory for tpu_custom_call.1']
  %s0 = inlined_call_operand.vmem [shape: f32[8,1024], index: 0, kind: input, shape index: {}]
  %s1 = inlined_call_operand.vmem [shape: bf16[1024,32], index: 1, kind: input, shape index: {}]
  %s2 = inlined_call_operand.vmem [shape: f32[1,32], index: 2, kind: input, shape index: {}]
  %s3 = inlined_call_operand.vmem [shape: f32[1,32], index: 3, kind: input, shape index: {}]
  %s4 = inlined_call_operand.<no memory space> [shape: f32[1,1], index: 4, kind: input, shape index: {}]
  %s5 = inlined_call_operand.hbm [shape: f32[8,128], index: 5, kind: output, shape index: {}]
  %s6 = sld [smem:[#allocation0]]
  $region61: #{tpu_custom_call.1} parent=0
    _
  %s8 = ssub.s32 1, %s6
  %s9 = scalar_select 0, %s8, %s6
  %v10 = vstv %s4
  %11 = vst [vmem:[#allocation3] sm:$0x1] %v10
  $region1: #{tpu_custom_call.1} parent=0
    #allocation4 [shape = 'u8[4096]{0}', space=vmem, size = 0x1000, scoped, tag = 'output window, operand 0, single buffered']
    #allocation5 [shape = 's32[2]{0}', space=sflag, size = 0x8, scoped, tag = 'scoped memory for tpu_custom_call.1']
    %12 = vsyncpa [#allocation5], 0
    loop: start=0, step=1, limit=4
    $region2: #{tpu_custom_call.1} parent=1 // loop_pre_header
      _
    $region3: #{tpu_custom_call.1} parent=1 // loop_header
      %s14 = sphi 0, %s18
      %p15 = scmp.ge.s32.totalorder %s14, 4
      %s21 = sphi 0, %s33
      %s22 = sphi 0, %s29
      %s23 = sphi 0, %s21
      %s24 = sphi 0, %s22
      %s25 = sphi 0, %s23
      %s26 = sphi 0, %s24
      %s38 = sphi 0, %s40
      %s41 = sphi 0, %s38
      %s42 = sphi 0, %s41
      %s58 = sphi 0, %s42
      %s64 = sphi 0, %s66
      %s67 = sphi 0, %s64
      %s68 = sphi 0, %s67
      %s84 = sphi 0, %s68
      %s88 = sphi 0, %s88
      %s90 = sphi 0, %s88
      %s91 = sphi 0, %s90
      %s105 = sphi 0, %s91
      %s109 = sphi 0, %s109
      %s111 = sphi 0, %s109
      %s112 = sphi 0, %s111
      %s126 = sphi 0, %s112
      %s130 = sphi 0, %s130
      %s132 = sphi 0, %s130
      %s133 = sphi 0, %s132
      %s147 = sphi 0, %s133
      %s153 = sphi 0, %s155
      %s156 = sphi 0, %s153
      %s157 = sphi 0, %s156
      %s173 = sphi 0, %s157
    $region4: #{tpu_custom_call.1} parent=1 // loop_header_branch
      %17 = sbr.rel (%p15) target = $region8
    $region5: #{tpu_custom_call.1} parent=1 // loop_body
      %s19 = ssub.s32 %s14, 1
      %s20 = ssub.s32 %s14, 2
      %s27 = sadd.s32 1, %s22
      %p28 = scmp.ge.s32.totalorder %s27, 2
      %s29 = scalar_select %p28, 0, %s27
      %s30 = sadd.s32 1, %s21
      %s31 = scalar_select %p28, %s30, %s21
      %p32 = scmp.ge.s32.totalorder %s31, 1
      %s33 = scalar_select %p32, 0, %s31
      %s34 = ssub.s32 %s21, %s33
      %s35 = ssub.s32 %s22, %s29
      %s36 = sor.u32 %s34, %s35
      %p37 = scmp.eq.s32.totalorder %s36, 0
      %s39 = sadd.s32 %s38, 1
      %s40 = scalar_select %p37, %s38, %s39
      %p43 = pneg %p37
      %p44 = scmp.eq.s32.totalorder %s14, 1
      %p45 = por %p43, %p44
      %p46 = scmp.ne.s32.totalorder %s38, %s41
      %p47 = scmp.eq.s32.totalorder %s14, 0
      %p48 = por %p46, %p47
      %p49 = scmp.ne.s32.totalorder %s38, %s41
      %p50 = scmp.eq.s32.totalorder %s19, 1
      %p51 = por %p49, %p50
      %p52 = scmp.ne.s32.totalorder %s41, %s42
      %p53 = scmp.eq.s32.totalorder %s19, 0
      %p54 = por %p52, %p53
      %p55 = scmp.ne.s32.totalorder %s41, %s42
      %p56 = scmp.eq.s32.totalorder %s20, 1
      %p57 = por %p55, %p56
      %p59 = scmp.ne.s32.totalorder %s42, %s58
      %p60 = scmp.eq.s32.totalorder %s20, 0
      %p61 = por %p59, %p60
      %s62 = ssub.s32 %s22, %s29
      %p63 = scmp.eq.s32.totalorder %s62, 0
      %s65 = sadd.s32 %s64, 1
      %s66 = scalar_select %p63, %s64, %s65
      %p69 = pneg %p63
      %p70 = scmp.eq.s32.totalorder %s14, 1
      %p71 = por %p69, %p70
      %p72 = scmp.ne.s32.totalorder %s64, %s67
      %p73 = scmp.eq.s32.totalorder %s14, 0
      %p74 = por %p72, %p73
      %p75 = scmp.ne.s32.totalorder %s64, %s67
      %p76 = scmp.eq.s32.totalorder %s19, 1
      %p77 = por %p75, %p76
      %p78 = scmp.ne.s32.totalorder %s67, %s68
      %p79 = scmp.eq.s32.totalorder %s19, 0
      %p80 = por %p78, %p79
      %p81 = scmp.ne.s32.totalorder %s67, %s68
      %p82 = scmp.eq.s32.totalorder %s20, 1
      %p83 = por %p81, %p82
      %p85 = scmp.ne.s32.totalorder %s68, %s84
      %p86 = scmp.eq.s32.totalorder %s20, 0
      %p87 = por %p85, %p86
      %s89 = sadd.s32 %s88, 1
      %p92 = scmp.eq.s32.totalorder %s14, 1
      %p93 = scmp.ne.s32.totalorder %s88, %s90
      %p94 = scmp.eq.s32.totalorder %s14, 0
      %p95 = por %p93, %p94
      %p96 = scmp.ne.s32.totalorder %s88, %s90
      %p97 = scmp.eq.s32.totalorder %s19, 1
      %p98 = por %p96, %p97
      %p99 = scmp.ne.s32.totalorder %s90, %s91
      %p100 = scmp.eq.s32.totalorder %s19, 0
      %p101 = por %p99, %p100
      %p102 = scmp.ne.s32.totalorder %s90, %s91
      %p103 = scmp.eq.s32.totalorder %s20, 1
      %p104 = por %p102, %p103
      %p106 = scmp.ne.s32.totalorder %s91, %s105
      %p107 = scmp.eq.s32.totalorder %s20, 0
      %p108 = por %p106, %p107
      %s110 = sadd.s32 %s109, 1
      %p113 = scmp.eq.s32.totalorder %s14, 1
      %p114 = scmp.ne.s32.totalorder %s109, %s111
      %p115 = scmp.eq.s32.totalorder %s14, 0
      %p116 = por %p114, %p115
      %p117 = scmp.ne.s32.totalorder %s109, %s111
      %p118 = scmp.eq.s32.totalorder %s19, 1
      %p119 = por %p117, %p118
      %p120 = scmp.ne.s32.totalorder %s111, %s112
      %p121 = scmp.eq.s32.totalorder %s19, 0
      %p122 = por %p120, %p121
      %p123 = scmp.ne.s32.totalorder %s111, %s112
      %p124 = scmp.eq.s32.totalorder %s20, 1
      %p125 = por %p123, %p124
      %p127 = scmp.ne.s32.totalorder %s112, %s126
      %p128 = scmp.eq.s32.totalorder %s20, 0
      %p129 = por %p127, %p128
      %s131 = sadd.s32 %s130, 1
      %p134 = scmp.eq.s32.totalorder %s14, 1
      %p135 = scmp.ne.s32.totalorder %s130, %s132
      %p136 = scmp.eq.s32.totalorder %s14, 0
      %p137 = por %p135, %p136
      %p138 = scmp.ne.s32.totalorder %s130, %s132
      %p139 = scmp.eq.s32.totalorder %s19, 1
      %p140 = por %p138, %p139
      %p141 = scmp.ne.s32.totalorder %s132, %s133
      %p142 = scmp.eq.s32.totalorder %s19, 0
      %p143 = por %p141, %p142
      %p144 = scmp.ne.s32.totalorder %s132, %s133
      %p145 = scmp.eq.s32.totalorder %s20, 1
      %p146 = por %p144, %p145
      %p148 = scmp.ne.s32.totalorder %s133, %s147
      %p149 = scmp.eq.s32.totalorder %s20, 0
      %p150 = por %p148, %p149
      %s151 = ssub.s32 %s21, %s33
      %p152 = scmp.eq.s32.totalorder %s151, 0
      %s154 = sadd.s32 %s153, 1
      %s155 = scalar_select %p152, %s153, %s154
      %p158 = pneg %p152
      %p159 = scmp.eq.s32.totalorder %s14, 1
      %p160 = por %p158, %p159
      %p161 = scmp.ne.s32.totalorder %s153, %s156
      %p162 = scmp.eq.s32.totalorder %s14, 0
      %p163 = por %p161, %p162
      %p164 = scmp.ne.s32.totalorder %s153, %s156
      %p165 = scmp.eq.s32.totalorder %s19, 1
      %p166 = por %p164, %p165
      %p167 = scmp.ne.s32.totalorder %s156, %s157
      %p168 = scmp.eq.s32.totalorder %s19, 0
      %p169 = por %p167, %p168
      %p170 = scmp.ne.s32.totalorder %s156, %s157
      %p171 = scmp.eq.s32.totalorder %s20, 1
      %p172 = por %p170, %p171
      %p174 = scmp.ne.s32.totalorder %s157, %s173
      %p175 = scmp.eq.s32.totalorder %s20, 0
      %p176 = por %p174, %p175
      %p177 = scmp.le.s32.totalorder 1, %s14
      %p178 = scmp.lt.s32.totalorder %s14, 3
      %p179 = pnand %p177, %p178
      %p180 = pneg %p179
      // Predicated region
      $region9: #{tpu_custom_call.1} parent=5 // pred_check
        _
      $region10: #{tpu_custom_call.1} parent=5 // pred_check_branch
        %182 = sbr.rel (%p179) target = $region12
      $region11: #{tpu_custom_call.1} parent=5 // pred_region
        %s183 = ssub.s32 %s14, 1
        // Predicated region
        $region13: #{tpu_custom_call.1} parent=11 // pred_check
          %p184 = pneg %p101
        $region14: #{tpu_custom_call.1} parent=11 // pred_check_branch
          %186 = sbr.rel (%p184) target = $region16
        $region15: #{tpu_custom_call.1} parent=11 // pred_region
          _
        $region16: #{tpu_custom_call.1} parent=11 // pred_fallthru
          _
        // Predicated region
        $region17: #{tpu_custom_call.1} parent=11 // pred_check
          %p187 = pneg %p122
        $region18: #{tpu_custom_call.1} parent=11 // pred_check_branch
          %189 = sbr.rel (%p187) target = $region20
        $region19: #{tpu_custom_call.1} parent=11 // pred_region
          _
        $region20: #{tpu_custom_call.1} parent=11 // pred_fallthru
          _
        // Predicated region
        $region21: #{tpu_custom_call.1} parent=11 // pred_check
          %p190 = pneg %p143
        $region22: #{tpu_custom_call.1} parent=11 // pred_check_branch
          %192 = sbr.rel (%p190) target = $region24
        $region23: #{tpu_custom_call.1} parent=11 // pred_region
          _
        $region24: #{tpu_custom_call.1} parent=11 // pred_fallthru
          _
      $region12: #{tpu_custom_call.1} parent=5 // pred_fallthru
        _
      %p193 = scmp.lt.s32.totalorder %s14, 2
      // Predicated region
      $region25: #{tpu_custom_call.1} parent=5 // pred_check
        %p194 = pneg %p193
      $region26: #{tpu_custom_call.1} parent=5 // pred_check_branch
        %196 = sbr.rel (%p194) target = $region28
      $region27: #{tpu_custom_call.1} parent=5 // pred_region
        // Predicated region
        $region29: #{tpu_custom_call.1} parent=27 // pred_check
          %p197 = pneg %p48
        $region30: #{tpu_custom_call.1} parent=27 // pred_check_branch
          %199 = sbr.rel (%p197) target = $region32
        $region31: #{tpu_custom_call.1} parent=27 // pred_region
          %s200 = smul.u32 4, %s22
          %p201 = scmp.lt.s32.totalorder %s21, 0
          %s202 = scalar_select %p201, %s21, 0
          %p203 = scmp.lt.s32.totalorder %s200, 7
          %s204 = scalar_select %p203, %s200, 7
          %s205 = smul.addr %s202, 8
          %s206 = sadd.s32 %s204, %s205
          %s207 = smul.addr %s206, 8
          %s208 = scalar_lea.vmem %s0, %s207
          %s209 = smul.u32 4, %s22
        $region32: #{tpu_custom_call.1} parent=27 // pred_fallthru
          _
        // Predicated region
        $region33: #{tpu_custom_call.1} parent=27 // pred_check
          %p210 = pneg %p74
        $region34: #{tpu_custom_call.1} parent=27 // pred_check_branch
          %212 = sbr.rel (%p210) target = $region36
        $region35: #{tpu_custom_call.1} parent=27 // pred_region
          %s213 = smul.u32 64, %s22
          %p214 = scmp.lt.s32.totalorder %s213, 127
          %s215 = scalar_select %p214, %s213, 127
          %s216 = smul.addr %s215, 4
          %s217 = scalar_lea.vmem %s1, %s216
          %s218 = smul.u32 64, %s22
        $region36: #{tpu_custom_call.1} parent=27 // pred_fallthru
          _
      $region28: #{tpu_custom_call.1} parent=5 // pred_fallthru
        _
      %p219 = scmp.le.s32.totalorder 1, %s14
      %p220 = scmp.lt.s32.totalorder %s14, 3
      %p221 = pnand %p219, %p220
      %p222 = pneg %p221
      // Predicated region
      $region37: #{tpu_custom_call.1} parent=5 // pred_check
        _
      $region38: #{tpu_custom_call.1} parent=5 // pred_check_branch
        %224 = sbr.rel (%p221) target = $region40
      $region39: #{tpu_custom_call.1} parent=5 // pred_region
        %s225 = ssub.s32 %s14, 1
        %s226 = smul.u32 4, %s24
        %p227 = scmp.lt.s32.totalorder %s23, 0
        %s228 = scalar_select %p227, %s23, 0
        %p229 = scmp.lt.s32.totalorder %s226, 7
        %s230 = scalar_select %p229, %s226, 7
        %s231 = smul.addr %s228, 8
        %s232 = sadd.s32 %s230, %s231
        %s233 = smul.addr %s232, 8
        %s234 = scalar_lea.vmem %s0, %s233
        %p235 = pneg %p54
        %p236 = pneg %p51
        %s237 = smul.u32 64, %s24
        %p238 = scmp.lt.s32.totalorder %s237, 127
        %s239 = scalar_select %p238, %s237, 127
        %s240 = smul.addr %s239, 4
        %s241 = scalar_lea.vmem %s1, %s240
        %p242 = pneg %p80
        %p243 = pneg %p77
        %p244 = pneg %p101
        %p245 = pneg %p98
        %p246 = pneg %p122
        %p247 = pneg %p119
        %p248 = pneg %p143
        %p249 = pneg %p140
        %p250 = pneg %p169
        %p251 = pneg %p166
        %s252 = smul.u32 4, %s24
        %p253 = scmp.lt.s32.totalorder %s23, 0
        %s254 = scalar_select %p253, %s23, 0
        %p255 = scmp.lt.s32.totalorder %s252, 7
        %s256 = scalar_select %p255, %s252, 7
        %s257 = smul.addr %s254, 8
        %s258 = sadd.s32 %s256, %s257
        %s259 = smul.addr %s258, 8
        %s260 = scalar_lea.vmem %s0, %s259
        %s261 = smul.u32 4, %s24
        %s262 = smul.u32 64, %s24
        %p263 = scmp.lt.s32.totalorder %s262, 127
        %s264 = scalar_select %p263, %s262, 127
        %s265 = smul.addr %s264, 4
        %s266 = scalar_lea.vmem %s1, %s265
        %s267 = smul.u32 64, %s24
        %p268 = scmp.eq.s32.totalorder %s24, 0
        // Predicated region
        $region41: #{tpu_custom_call.1} parent=39 // pred_check
          %p269 = pneg %p268
        $region42: #{tpu_custom_call.1} parent=39 // pred_check_branch
          %271 = sbr.rel (%p269) target = $region44
        $region43: #{tpu_custom_call.1} parent=39 // pred_region
          %vm272 = vcmask 261120
          %273 = vst.msk [vmem:[#allocation2] sm:$0xff] %vm272, 0.0
        $region44: #{tpu_custom_call.1} parent=39 // pred_fallthru
          _
        %v274 = vld [vmem:[#allocation2] sm:$0xff]
        %v275 = vld [vmem:[%s260] sm:$0xff]
        %v276 = vld [vmem:[%s260 + $0x8] sm:$0xff]
        %v277 = vld [vmem:[%s260 + $0x10] sm:$0xff]
        %v278 = vld [vmem:[%s260 + $0x18] sm:$0xff]
        %v279 = vpack.c.bf16 %v275, %v275
        %v280 = vpack.c.bf16 %v276, %v276
        %v281 = vpack.c.bf16 %v277, %v277
        %v282 = vpack.c.bf16 %v278, %v278
        %v283 = vld [vmem:[%s266] sm:$0xf]
        %v284 = vld [vmem:[%s266 + $0x4] sm:$0xf]
        %v285 = vld [vmem:[%s266 + $0x8] sm:$0xf]
        %v286 = vld [vmem:[%s266 + $0xc] sm:$0xf]
        %v287 = vld [vmem:[%s266 + $0x10] sm:$0xf]
        %v288 = vld [vmem:[%s266 + $0x14] sm:$0xf]
        %v289 = vld [vmem:[%s266 + $0x18] sm:$0xf]
        %v290 = vld [vmem:[%s266 + $0x1c] sm:$0xf]
        %v291 = vld [vmem:[%s266 + $0x20] sm:$0xf]
        %v292 = vld [vmem:[%s266 + $0x24] sm:$0xf]
        %v293 = vld [vmem:[%s266 + $0x28] sm:$0xf]
        %v294 = vld [vmem:[%s266 + $0x2c] sm:$0xf]
        %v295 = vld [vmem:[%s266 + $0x30] sm:$0xf]
        %v296 = vld [vmem:[%s266 + $0x34] sm:$0xf]
        %v297 = vld [vmem:[%s266 + $0x38] sm:$0xf]
        %v298 = vld [vmem:[%s266 + $0x3c] sm:$0xf]
        %v299 = vld [vmem:[%s266 + $0x40] sm:$0xf]
        %v300 = vld [vmem:[%s266 + $0x44] sm:$0xf]
        %v301 = vld [vmem:[%s266 + $0x48] sm:$0xf]
        %v302 = vld [vmem:[%s266 + $0x4c] sm:$0xf]
        %v303 = vld [vmem:[%s266 + $0x50] sm:$0xf]
        %v304 = vld [vmem:[%s266 + $0x54] sm:$0xf]
        %v305 = vld [vmem:[%s266 + $0x58] sm:$0xf]
        %v306 = vld [vmem:[%s266 + $0x5c] sm:$0xf]
        %v307 = vld [vmem:[%s266 + $0x60] sm:$0xf]
        %v308 = vld [vmem:[%s266 + $0x64] sm:$0xf]
        %v309 = vld [vmem:[%s266 + $0x68] sm:$0xf]
        %v310 = vld [vmem:[%s266 + $0x6c] sm:$0xf]
        %v311 = vld [vmem:[%s266 + $0x70] sm:$0xf]
        %v312 = vld [vmem:[%s266 + $0x74] sm:$0xf]
        %v313 = vld [vmem:[%s266 + $0x78] sm:$0xf]
        %v314 = vld [vmem:[%s266 + $0x7c] sm:$0xf]
        %v315 = vld [vmem:[%s266 + $0x80] sm:$0xf]
        %v316 = vld [vmem:[%s266 + $0x84] sm:$0xf]
        %v317 = vld [vmem:[%s266 + $0x88] sm:$0xf]
        %v318 = vld [vmem:[%s266 + $0x8c] sm:$0xf]
        %v319 = vld [vmem:[%s266 + $0x90] sm:$0xf]
        %v320 = vld [vmem:[%s266 + $0x94] sm:$0xf]
        %v321 = vld [vmem:[%s266 + $0x98] sm:$0xf]
        %v322 = vld [vmem:[%s266 + $0x9c] sm:$0xf]
        %v323 = vld [vmem:[%s266 + $0xa0] sm:$0xf]
        %v324 = vld [vmem:[%s266 + $0xa4] sm:$0xf]
        %v325 = vld [vmem:[%s266 + $0xa8] sm:$0xf]
        %v326 = vld [vmem:[%s266 + $0xac] sm:$0xf]
        %v327 = vld [vmem:[%s266 + $0xb0] sm:$0xf]
        %v328 = vld [vmem:[%s266 + $0xb4] sm:$0xf]
        %v329 = vld [vmem:[%s266 + $0xb8] sm:$0xf]
        %v330 = vld [vmem:[%s266 + $0xbc] sm:$0xf]
        %v331 = vld [vmem:[%s266 + $0xc0] sm:$0xf]
        %v332 = vld [vmem:[%s266 + $0xc4] sm:$0xf]
        %v333 = vld [vmem:[%s266 + $0xc8] sm:$0xf]
        %v334 = vld [vmem:[%s266 + $0xcc] sm:$0xf]
        %v335 = vld [vmem:[%s266 + $0xd0] sm:$0xf]
        %v336 = vld [vmem:[%s266 + $0xd4] sm:$0xf]
        %v337 = vld [vmem:[%s266 + $0xd8] sm:$0xf]
        %v338 = vld [vmem:[%s266 + $0xdc] sm:$0xf]
        %v339 = vld [vmem:[%s266 + $0xe0] sm:$0xf]
        %v340 = vld [vmem:[%s266 + $0xe4] sm:$0xf]
        %v341 = vld [vmem:[%s266 + $0xe8] sm:$0xf]
        %v342 = vld [vmem:[%s266 + $0xec] sm:$0xf]
        %v343 = vld [vmem:[%s266 + $0xf0] sm:$0xf]
        %v344 = vld [vmem:[%s266 + $0xf4] sm:$0xf]
        %v345 = vld [vmem:[%s266 + $0xf8] sm:$0xf]
        %v346 = vld [vmem:[%s266 + $0xfc] sm:$0xf]
        %v411 = vunpack.c.l.b16 %v283
        %v412 = vunpack.c.l.b16 %v284
        %v413 = vunpack.c.l.b16 %v285
        %v414 = vunpack.c.l.b16 %v286
        %v415 = vunpack.c.l.b16 %v287
        %v416 = vunpack.c.l.b16 %v288
        %v417 = vunpack.c.l.b16 %v289
        %v418 = vunpack.c.l.b16 %v290
        %v419 = vunpack.c.l.b16 %v291
        %v420 = vunpack.c.l.b16 %v292
        %v421 = vunpack.c.l.b16 %v293
        %v422 = vunpack.c.l.b16 %v294
        %v423 = vunpack.c.l.b16 %v295
        %v424 = vunpack.c.l.b16 %v296
        %v425 = vunpack.c.l.b16 %v297
        %v426 = vunpack.c.l.b16 %v298
        %v427 = vunpack.c.l.b16 %v299
        %v428 = vunpack.c.l.b16 %v300
        %v429 = vunpack.c.l.b16 %v301
        %v430 = vunpack.c.l.b16 %v302
        %v431 = vunpack.c.l.b16 %v303
        %v432 = vunpack.c.l.b16 %v304
        %v433 = vunpack.c.l.b16 %v305
        %v434 = vunpack.c.l.b16 %v306
        %v435 = vunpack.c.l.b16 %v307
        %v436 = vunpack.c.l.b16 %v308
        %v437 = vunpack.c.l.b16 %v309
        %v438 = vunpack.c.l.b16 %v310
        %v439 = vunpack.c.l.b16 %v311
        %v440 = vunpack.c.l.b16 %v312
        %v441 = vunpack.c.l.b16 %v313
        %v442 = vunpack.c.l.b16 %v314
        %v443 = vunpack.c.l.b16 %v315
        %v444 = vunpack.c.l.b16 %v316
        %v445 = vunpack.c.l.b16 %v317
        %v446 = vunpack.c.l.b16 %v318
        %v447 = vunpack.c.l.b16 %v319
        %v448 = vunpack.c.l.b16 %v320
        %v449 = vunpack.c.l.b16 %v321
        %v450 = vunpack.c.l.b16 %v322
        %v451 = vunpack.c.l.b16 %v323
        %v452 = vunpack.c.l.b16 %v324
        %v453 = vunpack.c.l.b16 %v325
        %v454 = vunpack.c.l.b16 %v326
        %v455 = vunpack.c.l.b16 %v327
        %v456 = vunpack.c.l.b16 %v328
        %v457 = vunpack.c.l.b16 %v329
        %v458 = vunpack.c.l.b16 %v330
        %v459 = vunpack.c.l.b16 %v331
        %v460 = vunpack.c.l.b16 %v332
        %v461 = vunpack.c.l.b16 %v333
        %v462 = vunpack.c.l.b16 %v334
        %v463 = vunpack.c.l.b16 %v335
        %v464 = vunpack.c.l.b16 %v336
        %v465 = vunpack.c.l.b16 %v337
        %v466 = vunpack.c.l.b16 %v338
        %v467 = vunpack.c.l.b16 %v339
        %v468 = vunpack.c.l.b16 %v340
        %v469 = vunpack.c.l.b16 %v341
        %v470 = vunpack.c.l.b16 %v342
        %v471 = vunpack.c.l.b16 %v343
        %v472 = vunpack.c.l.b16 %v344
        %v473 = vunpack.c.l.b16 %v345
        %v474 = vunpack.c.l.b16 %v346
        %v475 = vpack.c.b16 %v412, %v411
        %v476 = vpack.c.b16 %v414, %v413
        %v477 = vpack.c.b16 %v416, %v415
        %v478 = vpack.c.b16 %v418, %v417
        %v479 = vpack.c.b16 %v420, %v419
        %v480 = vpack.c.b16 %v422, %v421
        %v481 = vpack.c.b16 %v424, %v423
        %v482 = vpack.c.b16 %v426, %v425
        %v483 = vpack.c.b16 %v428, %v427
        %v484 = vpack.c.b16 %v430, %v429
        %v485 = vpack.c.b16 %v432, %v431
        %v486 = vpack.c.b16 %v434, %v433
        %v487 = vpack.c.b16 %v436, %v435
        %v488 = vpack.c.b16 %v438, %v437
        %v489 = vpack.c.b16 %v440, %v439
        %v490 = vpack.c.b16 %v442, %v441
        %v491 = vpack.c.b16 %v444, %v443
        %v492 = vpack.c.b16 %v446, %v445
        %v493 = vpack.c.b16 %v448, %v447
        %v494 = vpack.c.b16 %v450, %v449
        %v495 = vpack.c.b16 %v452, %v451
        %v496 = vpack.c.b16 %v454, %v453
        %v497 = vpack.c.b16 %v456, %v455
        %v498 = vpack.c.b16 %v458, %v457
        %v499 = vpack.c.b16 %v460, %v459
        %v500 = vpack.c.b16 %v462, %v461
        %v501 = vpack.c.b16 %v464, %v463
        %v502 = vpack.c.b16 %v466, %v465
        %v503 = vpack.c.b16 %v468, %v467
        %v504 = vpack.c.b16 %v470, %v469
        %v505 = vpack.c.b16 %v472, %v471
        %v506 = vpack.c.b16 %v474, %v473
        %539 = vmatpush.bf16.msra.mxu0 %v482
        %540 = vmatpush.bf16.msra.mxu0 %v481
        %541 = vmatpush.bf16.msra.mxu0 %v480
        %542 = vmatpush.bf16.msra.mxu0 %v479
        %543 = vmatpush.bf16.msra.mxu0 %v478
        %544 = vmatpush.bf16.msra.mxu0 %v477
        %545 = vmatpush.bf16.msra.mxu0 %v476
        %546 = vmatpush.bf16.msra.mxu0 %v475
        %547 = vmatmul.bf16.gmra.mxu0 %v279
        %v548 = vpop.f32.mrf.mxu0
        %v549 = vadd.f32 0.0, %v548
        %v550 = vpop.f32.mrf.mxu0
        %551 = vdwg.mxu0
        %552 = vmatpush.bf16.msra.mxu0 %v490
        %553 = vmatpush.bf16.msra.mxu0 %v489
        %554 = vmatpush.bf16.msra.mxu0 %v488
        %555 = vmatpush.bf16.msra.mxu0 %v487
        %556 = vmatpush.bf16.msra.mxu0 %v486
        %557 = vmatpush.bf16.msra.mxu0 %v485
        %558 = vmatpush.bf16.msra.mxu0 %v484
        %559 = vmatpush.bf16.msra.mxu0 %v483
        %560 = vmatmul.bf16.gmra.mxu0 %v280
        %v561 = vpop.f32.mrf.mxu0
        %v562 = vadd.f32 %v549, %v561
        %v563 = vpop.f32.mrf.mxu0
        %564 = vdwg.mxu0
        %565 = vmatpush.bf16.msra.mxu0 %v498
        %566 = vmatpush.bf16.msra.mxu0 %v497
        %567 = vmatpush.bf16.msra.mxu0 %v496
        %568 = vmatpush.bf16.msra.mxu0 %v495
        %569 = vmatpush.bf16.msra.mxu0 %v494
        %570 = vmatpush.bf16.msra.mxu0 %v493
        %571 = vmatpush.bf16.msra.mxu0 %v492
        %572 = vmatpush.bf16.msra.mxu0 %v491
        %573 = vmatmul.bf16.gmra.mxu0 %v281
        %v574 = vpop.f32.mrf.mxu0
        %v575 = vadd.f32 %v562, %v574
        %v576 = vpop.f32.mrf.mxu0
        %577 = vdwg.mxu0
        %578 = vmatpush.bf16.msra.mxu0 %v506
        %579 = vmatpush.bf16.msra.mxu0 %v505
        %580 = vmatpush.bf16.msra.mxu0 %v504
        %581 = vmatpush.bf16.msra.mxu0 %v503
        %582 = vmatpush.bf16.msra.mxu0 %v502
        %583 = vmatpush.bf16.msra.mxu0 %v501
        %584 = vmatpush.bf16.msra.mxu0 %v500
        %585 = vmatpush.bf16.msra.mxu0 %v499
        %586 = vmatmul.bf16.gmra.mxu0 %v282
        %v587 = vpop.f32.mrf.mxu0
        %v588 = vadd.f32 %v575, %v587
        %v589 = vpop.f32.mrf.mxu0
        %590 = vdwg.mxu0
        %v591 = vadd.f32 %v274, %v588
        %vm592 = vcmask 261120
        %593 = vst.msk [vmem:[#allocation2] sm:$0xff] %vm592, %v591
        %p594 = scmp.eq.s32.totalorder %s24, 1
        // Predicated region
        $region45: #{tpu_custom_call.1} parent=39 // pred_check
          %p595 = pneg %p594
        $region46: #{tpu_custom_call.1} parent=39 // pred_check_branch
          %597 = sbr.rel (%p595) target = $region48
        $region47: #{tpu_custom_call.1} parent=39 // pred_region
          %v598 = vld [vmem:[#allocation2] sm:$0xff]
          %v599 = vld [vmem:[%s2] sm:$0x1]
          %v601 = vperm.slane %v599, 0
          %v603 = vadd.f32 %v598, %v601
          %vm604 = vcmp.gt.f32.partialorder %v603, 0.0
          %v605 = vmul.f32 %v603, 0.2
          %v606 = vsel %vm604, %v603, %v605
          %v607 = vld [vmem:[%s3] sm:$0x1]
          %v609 = vperm.slane %v607, 0
          %v611 = vmul.f32 %v606, %v609
          %v612 = vsel %vm592, %v611, 0.0
          %613 = vadd.xlane.f32.xlu0 %v612
          %v614 = vpop.xlane.xlu0 %613
          %v615 = vld [vmem:[#allocation3] sm:$0x1]
          %v617 = vperm.slane %v615, 0
          %v619 = vadd.f32 %v614, %v617
          %v620 = vsub.f32 0.0, %v619
          %v621 = vmul.f32 %v620, 1.442695
          %v622 = vpow.pop %v621
          %v623 = vadd.f32 %v622, 1.0
          %v624 = vrcp.pop %v623
          %626 = vset.pattern.permute.xlu0 0
          %627 = vperm.xlu0 %626, %v624
          %v628 = vpop.permute.xlu0 %627
          %630 = vst [vmem:[#allocation4] sm:$0xff] %v628
        $region48: #{tpu_custom_call.1} parent=39 // pred_fallthru
          _
        // Predicated region
        $region49: #{tpu_custom_call.1} parent=39 // pred_check
          %p631 = pneg %p166
        $region50: #{tpu_custom_call.1} parent=39 // pred_check_branch
          %633 = sbr.rel (%p631) target = $region52
        $region51: #{tpu_custom_call.1} parent=39 // pred_region
          %635 = vsyncadd [#allocation5], 0
          %s636 = smul.addr %s23, 8
          %s637 = scalar_lea.hbm %s5, %s636
          %s639 = sshll.u32 [#allocation4], 4
          %s640 = int_to_ptr.vmem [resolvable:$true] %s639
          %s641 = sshll.u32 %s637, 4
          %s642 = int_to_ptr.hbm [resolvable:$true] %s641
          %644 = dma.vmem_to_hbm [thread:$0]  %s640, 128, %s642, [#allocation5]
        $region52: #{tpu_custom_call.1} parent=39 // pred_fallthru
          _
        // Predicated region
        $region53: #{tpu_custom_call.1} parent=39 // pred_check
          %p645 = pneg %p166
        $region54: #{tpu_custom_call.1} parent=39 // pred_check_branch
          %647 = sbr.rel (%p645) target = $region56
        $region55: #{tpu_custom_call.1} parent=39 // pred_region
          %649 = dma.done [#allocation5], 128
        $region56: #{tpu_custom_call.1} parent=39 // pred_fallthru
          _
      $region40: #{tpu_custom_call.1} parent=5 // pred_fallthru
        _
      %p650 = scmp.le.s32.totalorder 2, %s14
      // Predicated region
      $region57: #{tpu_custom_call.1} parent=5 // pred_check
        %p651 = pneg %p650
      $region58: #{tpu_custom_call.1} parent=5 // pred_check_branch
        %653 = sbr.rel (%p651) target = $region60
      $region59: #{tpu_custom_call.1} parent=5 // pred_region
        %s654 = ssub.s32 %s14, 2
      $region60: #{tpu_custom_call.1} parent=5 // pred_fallthru
        _
    $region6: #{tpu_custom_call.1} parent=1 // loop_footer
      %s18 = sadd.s32 1, %s14
    $region7: #{tpu_custom_call.1} parent=1 // loop_footer_branch
      %13 = sbr.rel target = $region3
    $region8: #{tpu_custom_call.1} parent=1 // loop_exit
      _
    %655 = vsyncpa [#allocation5], 1
    %s656 = scalar_lea.sflag [#allocation5], 1
    %657 = vsyncpa %s656, 1

</llo_original>
